<compile_context>
chip_gen: v7x
topology: tpu7x:2x2x1
jax: 0.10.0
libtpu: 0.0.40
codegen_flags: <defaults>
</compile_context>

<pallas_src>
import jax
import jax.numpy as jnp
from jax.experimental import pallas as pl
from jax.experimental.pallas import tpu as pltpu

C_IN, C_OUT, K = 3, 16, 3
H1, H2, H3, OUT = 100, 100, 50, 10   # Linear(100,100), Linear(100,50), Linear(50,10)
LANE = 128                           # lane-dense padded width for all activations/outputs


# ---------------------------------------------------------------------------
# Fused Pallas kernel: conv (one matmul / image, bias folded in) + 3-layer MLP.
# All activations stay in VMEM; all matmuls are lane-dense (K = 80 or 128).
# ---------------------------------------------------------------------------
def _fused_kernel(x_ref, p_ref, w1_ref, b1_ref, w2_ref, b2_ref, w3_ref, b3_ref,
                  o_ref, conv_scr):
    # x_ref   : (BN, KEXT, 128)  bf16   per-step stacked/shifted image block (+ ones row)
    # p_ref   : (RPI, KEXT)      bf16   resident conv row-mix matrix (+ bias column)
    # w1..w3  : (128, 128)       bf16   resident, zero-padded
    # b1..b3  : (1, 128)         f32    resident, zero-padded
    # o_ref   : (BN*RPI, 128)    bf16   lane-dense output block
    # conv_scr: (BN*RPI, 128)    bf16   VMEM scratch holding the conv output
    bn = x_ref.shape[0]
    rpi = p_ref.shape[0]
    p = p_ref[...]

    # ---- conv: one (RPI, KEXT) @ (KEXT, 128) MXU matmul per image -------------------
    def conv_body(img, carry):
        acc = jnp.dot(p, x_ref[img], preferred_element_type=jnp.float32)
        start = pl.multiple_of(img * rpi, rpi)
        conv_scr[pl.ds(start, rpi), :] = acc.astype(conv_scr.dtype)
        return carry

    jax.lax.fori_loop(0, bn, conv_body, 0, unroll=True)

    # ---- fused MLP over all rows of the block (activations never leave VMEM) --------
    h = conv_scr[...]                                                     # bf16 (BN*RPI, 128)
    h = jnp.dot(h, w1_ref[...], preferred_element_type=jnp.float32) + b1_ref[...]
    h = jnp.maximum(h, 0.0).astype(jnp.bfloat16)
    h = jnp.dot(h, w2_ref[...], preferred_element_type=jnp.float32) + b2_ref[...]
    h = jnp.maximum(h, 0.0).astype(jnp.bfloat16)
    o_ref[...] = (jnp.dot(h, w3_ref[...], preferred_element_type=jnp.float32)
                  + b3_ref[...]).astype(o_ref.dtype)


# ---------------------------------------------------------------------------
# Wrapper-side weight preprocessing (done once, plain JAX glue)
# ---------------------------------------------------------------------------
def _conv_row_mix(conv_w, H, OH):
    """P[kw, oh*CO+co, ci*H+h] = W[co,ci,h-oh,kw] (0 if h-oh not in [0,K))."""
    CO, CI, KH, KW = conv_w.shape
    oh = jnp.arange(OH)
    h = jnp.arange(H)
    kh = h[None, :] - oh[:, None]                           # (OH, H)
    valid = ((kh >= 0) & (kh < KH)).astype(conv_w.dtype)
    kh_c = jnp.clip(kh, 0, KH - 1)
    wg = conv_w[:, :, kh_c, :]                              # (CO, CI, OH, H, KW)
    wg = wg * valid[None, None, :, :, None]
    p = wg.transpose(4, 2, 0, 1, 3)                         # (KW, OH, CO, CI, H)
    return p.reshape(KW, OH * CO, CI * H)


def _round_up(v, m):
    return ((v + m - 1) // m) * m


def _choose_bn(n, max_images=32):
    """Images per grid step: big M tile for the MXU, but >= 2 steps when N >= 2
    so v7x's two TensorCores both get work (grid axis is 'parallel')."""
    if n <= 1:
        return 1
    return min(max_images, -(-n // 2))   # ceil(n/2), capped


# ---------------------------------------------------------------------------
# Forward pass
# ---------------------------------------------------------------------------
def simple_net_forward(x, params):
    """x: (N, 3, H, W) float32 NCHW; W must be 102 so Linear(100, .) applies."""
    conv_w, conv_b, w1, b1, w2, b2, w3, b3 = params
    N, Ci, H, W = x.shape
    assert Ci == C_IN and H >= K
    OH, OW = H - (K - 1), W - (K - 1)
    assert OW == H1, "width after 3x3 valid conv must equal 100 (Linear in-features)"

    RPI = OH * C_OUT                     # MLP rows per image, ordered (oh, co)
    KCIH = K * C_IN * H                  # conv contraction size (72 for H=8)
    KEXT = _round_up(KCIH + 1, 16)       # + bias row, rounded for clean bf16 sublane tiling

    BN = _choose_bn(N)
    N_pad = pl.cdiv(N, BN) * BN
    grid = (N_pad // BN,)

    bf, f32 = jnp.bfloat16, jnp.float32

    # ---- stack the K shifted width-slices of x (kw-major), pad lanes, add ones row ----
    x3 = x.reshape(N, C_IN * H, W)
    x_st = jnp.concatenate([x3[:, :, kw:kw + OW] for kw in range(K)], axis=1)  # (N,72,100)
    x_ext = jnp.zeros((N, KEXT, LANE), f32)
    x_ext = x_ext.at[:, :KCIH, :OW].set(x_st)
    x_ext = x_ext.at[:, KCIH, :].set(1.0)                  # ones row -> conv bias via matmul
    x_ext = jnp.pad(x_ext, ((0, N_pad - N), (0, 0), (0, 0))).astype(bf)

    # ---- conv row-mix matrix with the bias folded in as an extra column ----
    p = _conv_row_mix(conv_w, H, OH)                       # (K, RPI, CI*H)
    p = p.transpose(1, 0, 2).reshape(RPI, KCIH)            # (RPI, 72), (kw, ci, h) order
    p_ext = jnp.zeros((RPI, KEXT), f32)
    p_ext = p_ext.at[:, :KCIH].set(p)
    p_ext = p_ext.at[:, KCIH].set(jnp.tile(conv_b, OH))    # bias column, row order (oh, co)
    p_ext = p_ext.astype(bf)

    # ---- MLP weights / biases zero-padded to lane-dense 128 everywhere ----
    def pad2(w):
        return jnp.pad(w, ((0, LANE - w.shape[0]), (0, LANE - w.shape[1]))).astype(bf)

    w1p, w2p, w3p = pad2(w1), pad2(w2), pad2(w3)
    b1p = jnp.pad(b1, (0, LANE - H2)).reshape(1, LANE).astype(f32)
    b2p = jnp.pad(b2, (0, LANE - H3)).reshape(1, LANE).astype(f32)
    b3p = jnp.pad(b3, (0, LANE - OUT)).reshape(1, LANE).astype(f32)

    flops = 2 * N_pad * RPI * LANE * (KEXT + 3 * LANE)
    bytes_accessed = (x_ext.size * 2 + N_pad * RPI * LANE * 2
                      + (p_ext.size + w1p.size + w2p.size + w3p.size) * 2
                      + (b1p.size + b2p.size + b3p.size) * 4)

    out_flat = pl.pallas_call(
        _fused_kernel,
        out_shape=jax.ShapeDtypeStruct((N_pad * RPI, LANE), bf),
        grid=grid,
        in_specs=[
            pl.BlockSpec((BN, KEXT, LANE), lambda i: (i, 0, 0)),   # x block (per step)
            pl.BlockSpec((RPI, KEXT), lambda i: (0, 0)),           # P (+bias col), resident
            pl.BlockSpec((LANE, LANE), lambda i: (0, 0)),          # w1 resident
            pl.BlockSpec((1, LANE), lambda i: (0, 0)),             # b1
            pl.BlockSpec((LANE, LANE), lambda i: (0, 0)),          # w2
            pl.BlockSpec((1, LANE), lambda i: (0, 0)),             # b2
            pl.BlockSpec((LANE, LANE), lambda i: (0, 0)),          # w3
            pl.BlockSpec((1, LANE), lambda i: (0, 0)),             # b3
        ],
        out_specs=pl.BlockSpec((BN * RPI, LANE), lambda i: (i, 0)),
        scratch_shapes=[pltpu.VMEM((BN * RPI, LANE), bf)],
        compiler_params=pltpu.CompilerParams(dimension_semantics=("parallel",)),
        cost_estimate=pl.CostEstimate(flops=flops, transcendentals=0,
                                      bytes_accessed=bytes_accessed),
    )(x_ext, p_ext, w1p, b1p, w2p, b2p, w3p, b3p)

    # tiny glue: drop batch pad / lane pad, reorder (n, oh, co) -> (n, co, oh)
    y = out_flat.reshape(N_pad, OH, C_OUT, LANE)[:N, :, :, :OUT]
    return y.transpose(0, 2, 1, 3).astype(jnp.float32)     # (N, 16, OH, 10)


# ---------------------------------------------------------------------------
# Deterministic parameter init (shapes from SimpleNet.__init__); synthetic weights.
# Linear weights are stored pre-transposed as (in, out) so the kernel does x @ W + b.
# ---------------------------------------------------------------------------
def init_params(key):
    ks = jax.random.split(key, 8)
    conv_w = jax.random.normal(ks[0], (C_OUT, C_IN, K, K), jnp.float32) * (2.0 / (C_IN * K * K)) ** 0.5
    conv_b = jax.random.normal(ks[1], (C_OUT,), jnp.float32) * 0.01
    w1 = jax.random.normal(ks[2], (H1, H2), jnp.float32) * (2.0 / H1) ** 0.5
    b1 = jax.random.normal(ks[3], (H2,), jnp.float32) * 0.01
    w2 = jax.random.normal(ks[4], (H2, H3), jnp.float32) * (2.0 / H2) ** 0.5
    b2 = jax.random.normal(ks[5], (H3,), jnp.float32) * 0.01
    w3 = jax.random.normal(ks[6], (H3, OUT), jnp.float32) * (2.0 / H3) ** 0.5
    b3 = jax.random.normal(ks[7], (OUT,), jnp.float32) * 0.01
    return (conv_w, conv_b, w1, b1, w2, b2, w3, b3)


def reference_forward(x, params):
    conv_w, conv_b, w1, b1, w2, b2, w3, b3 = params
    c = jax.lax.conv_general_dilated(
        x, conv_w, window_strides=(1, 1), padding="VALID",
        dimension_numbers=("NCHW", "OIHW", "NCHW")) + conv_b[None, :, None, None]
    h = jnp.maximum(c @ w1 + b1, 0.0)
    h = jnp.maximum(h @ w2 + b2, 0.0)
    return h @ w3 + b3


if __name__ == "__main__":
    key = jax.random.PRNGKey(0)
    kx, kp = jax.random.split(key)
    # Input: batch=2, channels=3, H=8, W=102  (W=102 -> conv width 100 -> Linear(100, .))
    x = jax.random.normal(kx, (2, C_IN, 8, 102), jnp.float32)
    params = init_params(kp)

    y = jax.jit(simple_net_forward)(x, params)
    y = jax.block_until_ready(y)

    y_ref = reference_forward(x, params)
    assert y.shape == (2, C_OUT, 6, OUT), y.shape
    max_err = float(jnp.max(jnp.abs(y - y_ref)))
    # bf16 matmul operands / bf16 output with f32 accumulation -> bf16-level tolerance
    assert jnp.allclose(y, y_ref, rtol=3e-2, atol=3e-2), max_err

    print("KERNEL_OK")
</pallas_src>

<mosaic_0001>
module attributes {stable_mosaic.version = 11 : i64} {
  func.func @_fused_kernel(%arg0: i32, %arg1: memref<1x80x128xbf16, #tpu.memory_space<vmem>>, %arg2: memref<96x80xbf16, #tpu.memory_space<vmem>>, %arg3: memref<128x128xbf16, #tpu.memory_space<vmem>>, %arg4: memref<1x128xf32, #tpu.memory_space<vmem>>, %arg5: memref<128x128xbf16, #tpu.memory_space<vmem>>, %arg6: memref<1x128xf32, #tpu.memory_space<vmem>>, %arg7: memref<128x128xbf16, #tpu.memory_space<vmem>>, %arg8: memref<1x128xf32, #tpu.memory_space<vmem>>, %arg9: memref<96x128xbf16, #tpu.memory_space<vmem>>, %arg10: memref<96x128xbf16, #tpu.memory_space<vmem>>) attributes {dimension_semantics = [#tpu.dimension_semantics<parallel>], iteration_bounds = array<i64: 2>, scalar_prefetch = 0 : i64, scratch_operands = 1 : i64, tpu.core_type = #tpu.core_type<tc>, window_params = [{transform_indices = @transform_0, window_bounds = array<i64: 1, 80, 128>}, {pipeline_mode = #tpu.pipeline_mode<synchronous>, transform_indices = @transform_1, window_bounds = array<i64: 96, 80>}, {pipeline_mode = #tpu.pipeline_mode<synchronous>, transform_indices = @transform_2, window_bounds = array<i64: 128, 128>}, {pipeline_mode = #tpu.pipeline_mode<synchronous>, transform_indices = @transform_3, window_bounds = array<i64: 1, 128>}, {pipeline_mode = #tpu.pipeline_mode<synchronous>, transform_indices = @transform_4, window_bounds = array<i64: 128, 128>}, {pipeline_mode = #tpu.pipeline_mode<synchronous>, transform_indices = @transform_5, window_bounds = array<i64: 1, 128>}, {pipeline_mode = #tpu.pipeline_mode<synchronous>, transform_indices = @transform_6, window_bounds = array<i64: 128, 128>}, {pipeline_mode = #tpu.pipeline_mode<synchronous>, transform_indices = @transform_7, window_bounds = array<i64: 1, 128>}, {transform_indices = @transform_8, window_bounds = array<i64: 96, 128>}]} {
    %c0 = arith.constant 0 : index
    %c0_0 = arith.constant 0 : index
    %0 = vector.load %arg2[%c0, %c0_0] : memref<96x80xbf16, #tpu.memory_space<vmem>>, vector<96x80xbf16>
    %c0_i32 = arith.constant 0 : i32
    %1 = arith.index_cast %c0_i32 : i32 to index
    %c0_1 = arith.constant 0 : index
    %c0_2 = arith.constant 0 : index
    %2 = vector.load %arg1[%1, %c0_1, %c0_2] : memref<1x80x128xbf16, #tpu.memory_space<vmem>>, vector<1x80x128xbf16>
    %3 = vector.shape_cast %2 : vector<1x80x128xbf16> to vector<80x128xbf16>
    %cst = arith.constant dense<0.000000e+00> : vector<96x128xf32>
    %4 = tpu.matmul %0, %3, %cst {dimension_numbers = #tpu.dot_dimension_numbers<[1], [0], [0], [1], [0, 0, 1, 1], [], []>} : vector<96x80xbf16>, vector<80x128xbf16>, vector<96x128xf32> -> vector<96x128xf32>
    %c96_i32 = arith.constant 96 : i32
    %5 = arith.muli %c0_i32, %c96_i32 : i32
    %6 = tpu.assume_multiple %5, 96 : i32
    %7 = arith.truncf %4 : vector<96x128xf32> to vector<96x128xbf16>
    %8 = arith.index_cast %6 : i32 to index
    %c0_3 = arith.constant 0 : index
    %9 = vector.load %arg10[%8, %c0_3] : memref<96x128xbf16, #tpu.memory_space<vmem>>, vector<96x128xbf16>
    tpu.vector_store %arg10[%8, %c0_3], %7 {strides = array<i32>} : memref<96x128xbf16, #tpu.memory_space<vmem>>, vector<96x128xbf16>,
    %c1_i32 = arith.constant 1 : i32
    %c0_4 = arith.constant 0 : index
    %c0_5 = arith.constant 0 : index
    %10 = vector.load %arg10[%c0_4, %c0_5] : memref<96x128xbf16, #tpu.memory_space<vmem>>, vector<96x128xbf16>
    %c0_6 = arith.constant 0 : index
    %c0_7 = arith.constant 0 : index
    %11 = vector.load %arg3[%c0_6, %c0_7] : memref<128x128xbf16, #tpu.memory_space<vmem>>, vector<128x128xbf16>
    %cst_8 = arith.constant dense<0.000000e+00> : vector<96x128xf32>
    %12 = tpu.matmul %10, %11, %cst_8 {dimension_numbers = #tpu.dot_dimension_numbers<[1], [0], [0], [1], [0, 0, 1, 1], [], []>} : vector<96x128xbf16>, vector<128x128xbf16>, vector<96x128xf32> -> vector<96x128xf32>
    %c0_9 = arith.constant 0 : index
    %c0_10 = arith.constant 0 : index
    %13 = vector.load %arg4[%c0_9, %c0_10] : memref<1x128xf32, #tpu.memory_space<vmem>>, vector<1x128xf32>
    %14 = vector.broadcast %13 : vector<1x128xf32> to vector<96x128xf32>
    %15 = arith.addf %12, %14 : vector<96x128xf32>
    %cst_11 = arith.constant 0.000000e+00 : f32
    %16 = vector.broadcast %cst_11 : f32 to vector<96x128xf32>
    %17 = arith.maximumf %15, %16 : vector<96x128xf32>
    %18 = arith.truncf %17 : vector<96x128xf32> to vector<96x128xbf16>
    %c0_12 = arith.constant 0 : index
    %c0_13 = arith.constant 0 : index
    %19 = vector.load %arg5[%c0_12, %c0_13] : memref<128x128xbf16, #tpu.memory_space<vmem>>, vector<128x128xbf16>
    %cst_14 = arith.constant dense<0.000000e+00> : vector<96x128xf32>
    %20 = tpu.matmul %18, %19, %cst_14 {dimension_numbers = #tpu.dot_dimension_numbers<[1], [0], [0], [1], [0, 0, 1, 1], [], []>} : vector<96x128xbf16>, vector<128x128xbf16>, vector<96x128xf32> -> vector<96x128xf32>
    %c0_15 = arith.constant 0 : index
    %c0_16 = arith.constant 0 : index
    %21 = vector.load %arg6[%c0_15, %c0_16] : memref<1x128xf32, #tpu.memory_space<vmem>>, vector<1x128xf32>
    %22 = vector.broadcast %21 : vector<1x128xf32> to vector<96x128xf32>
    %23 = arith.addf %20, %22 : vector<96x128xf32>
    %cst_17 = arith.constant 0.000000e+00 : f32
    %24 = vector.broadcast %cst_17 : f32 to vector<96x128xf32>
    %25 = arith.maximumf %23, %24 : vector<96x128xf32>
    %26 = arith.truncf %25 : vector<96x128xf32> to vector<96x128xbf16>
    %c0_18 = arith.constant 0 : index
    %c0_19 = arith.constant 0 : index
    %27 = vector.load %arg7[%c0_18, %c0_19] : memref<128x128xbf16, #tpu.memory_space<vmem>>, vector<128x128xbf16>
    %cst_20 = arith.constant dense<0.000000e+00> : vector<96x128xf32>
    %28 = tpu.matmul %26, %27, %cst_20 {dimension_numbers = #tpu.dot_dimension_numbers<[1], [0], [0], [1], [0, 0, 1, 1], [], []>} : vector<96x128xbf16>, vector<128x128xbf16>, vector<96x128xf32> -> vector<96x128xf32>
    %c0_21 = arith.constant 0 : index
    %c0_22 = arith.constant 0 : index
    %29 = vector.load %arg8[%c0_21, %c0_22] : memref<1x128xf32, #tpu.memory_space<vmem>>, vector<1x128xf32>
    %30 = vector.broadcast %29 : vector<1x128xf32> to vector<96x128xf32>
    %31 = arith.addf %28, %30 : vector<96x128xf32>
    %32 = arith.truncf %31 : vector<96x128xf32> to vector<96x128xbf16>
    %c0_23 = arith.constant 0 : index
    %c0_24 = arith.constant 0 : index
    %33 = vector.load %arg9[%c0_23, %c0_24] : memref<96x128xbf16, #tpu.memory_space<vmem>>, vector<96x128xbf16>
    tpu.vector_store %arg9[%c0_23, %c0_24], %32 {strides = array<i32>} : memref<96x128xbf16, #tpu.memory_space<vmem>>, vector<96x128xbf16>,
    return
  }
  func.func @transform_0(%arg0: i32) -> (i32, i32, i32) {
    %c0_i32 = arith.constant 0 : i32
    %c0_i32_0 = arith.constant 0 : i32
    %c0_i32_1 = arith.constant 0 : i32
    return %arg0, %c0_i32, %c0_i32_0 : i32, i32, i32
  }
  func.func @transform_1(%arg0: i32) -> (i32, i32) {
    %c0_i32 = arith.constant 0 : i32
    %c0_i32_0 = arith.constant 0 : i32
    %c0_i32_1 = arith.constant 0 : i32
    return %c0_i32, %c0_i32_0 : i32, i32
  }
  func.func @transform_2(%arg0: i32) -> (i32, i32) {
    %c0_i32 = arith.constant 0 : i32
    %c0_i32_0 = arith.constant 0 : i32
    %c0_i32_1 = arith.constant 0 : i32
    return %c0_i32, %c0_i32_0 : i32, i32
  }
  func.func @transform_3(%arg0: i32) -> (i32, i32) {
    %c0_i32 = arith.constant 0 : i32
    %c0_i32_0 = arith.constant 0 : i32
    %c0_i32_1 = arith.constant 0 : i32
    return %c0_i32, %c0_i32_0 : i32, i32
  }
  func.func @transform_4(%arg0: i32) -> (i32, i32) {
    %c0_i32 = arith.constant 0 : i32
    %c0_i32_0 = arith.constant 0 : i32
    %c0_i32_1 = arith.constant 0 : i32
    return %c0_i32, %c0_i32_0 : i32, i32
  }
  func.func @transform_5(%arg0: i32) -> (i32, i32) {
    %c0_i32 = arith.constant 0 : i32
    %c0_i32_0 = arith.constant 0 : i32
    %c0_i32_1 = arith.constant 0 : i32
    return %c0_i32, %c0_i32_0 : i32, i32
  }
  func.func @transform_6(%arg0: i32) -> (i32, i32) {
    %c0_i32 = arith.constant 0 : i32
    %c0_i32_0 = arith.constant 0 : i32
    %c0_i32_1 = arith.constant 0 : i32
    return %c0_i32, %c0_i32_0 : i32, i32
  }
  func.func @transform_7(%arg0: i32) -> (i32, i32) {
    %c0_i32 = arith.constant 0 : i32
    %c0_i32_0 = arith.constant 0 : i32
    %c0_i32_1 = arith.constant 0 : i32
    return %c0_i32, %c0_i32_0 : i32, i32
  }
  func.func @transform_8(%arg0: i32) -> (i32, i32) {
    %c0_i32 = arith.constant 0 : i32
    %c0_i32_0 = arith.constant 0 : i32
    return %arg0, %c0_i32 : i32, i32
  }
}

</mosaic_0001>

<llo_original>
// kernel: simple_net_forward.1
$region0: #{simple_net_forward.1}
  #allocation0 [shape = 'u32[]', space=smem, size = 0x4, offset = 0x4, fixed_abs, tag = 'smem constant byte address 0x4 - core index']
  #allocation1 [shape = 'u32[144,128]{1,0:T(1,128)}', space=vmem, size = 0x12000, scoped, tag = 'internal scratch']
  #allocation2 [shape = 'bf16[96,128]{1,0:T(16,128)(2,1)}', space=vmem, size = 0x6000, scoped, tag = 'scratch operand']
  %s0 = inlined_call_operand.vmem [shape: bf16[2,80,128], index: 0, kind: input, shape index: {}]
  %s1 = inlined_call_operand.vmem [shape: bf16[96,80], index: 1, kind: input, shape index: {}]
  %s2 = inlined_call_operand.vmem [shape: bf16[128,128], index: 2, kind: input, shape index: {}]
  %s3 = inlined_call_operand.vmem [shape: f32[1,128], index: 3, kind: input, shape index: {}]
  %s4 = inlined_call_operand.vmem [shape: bf16[128,128], index: 4, kind: input, shape index: {}]
  %s5 = inlined_call_operand.vmem [shape: f32[1,128], index: 5, kind: input, shape index: {}]
  %s6 = inlined_call_operand.vmem [shape: bf16[128,128], index: 6, kind: input, shape index: {}]
  %s7 = inlined_call_operand.vmem [shape: f32[1,128], index: 7, kind: input, shape index: {}]
  %s8 = inlined_call_operand.vmem [shape: bf16[192,128], index: 8, kind: output, shape index: {}]
  %s9 = sld [smem:[#allocation0]]
  $region65: #{simple_net_forward.1} parent=0
    _
  %s11 = ssub.s32 1, %s9
  %s12 = scalar_select 0, %s11, %s9
  loop: start=0, step=1, limit=4
  $region2: #{simple_net_forward.1} parent=0 // loop_pre_header
    _
  $region3: #{simple_net_forward.1} parent=0 // loop_header
    %s14 = sphi 0, %s18
    %p15 = scmp.ge.s32.totalorder %s14, 4
    %s24 = sphi 0, %s26
    %s27 = sphi 0, %s24
    %s28 = sphi 0, %s27
    %s44 = sphi 0, %s28
    %s48 = sphi 0, %s48
    %s50 = sphi 0, %s48
    %s51 = sphi 0, %s50
    %s65 = sphi 0, %s51
    %s69 = sphi 0, %s69
    %s71 = sphi 0, %s69
    %s72 = sphi 0, %s71
    %s86 = sphi 0, %s72
    %s90 = sphi 0, %s90
    %s92 = sphi 0, %s90
    %s93 = sphi 0, %s92
    %s107 = sphi 0, %s93
    %s111 = sphi 0, %s111
    %s113 = sphi 0, %s111
    %s114 = sphi 0, %s113
    %s128 = sphi 0, %s114
    %s132 = sphi 0, %s132
    %s134 = sphi 0, %s132
    %s135 = sphi 0, %s134
    %s149 = sphi 0, %s135
    %s153 = sphi 0, %s153
    %s155 = sphi 0, %s153
    %s156 = sphi 0, %s155
    %s170 = sphi 0, %s156
    %s174 = sphi 0, %s174
    %s176 = sphi 0, %s174
    %s177 = sphi 0, %s176
    %s191 = sphi 0, %s177
    %s197 = sphi 0, %s199
    %s200 = sphi 0, %s197
    %s201 = sphi 0, %s200
    %s217 = sphi 0, %s201
  $region4: #{simple_net_forward.1} parent=0 // loop_header_branch
    %17 = sbr.rel (%p15) target = $region8
  $region5: #{simple_net_forward.1} parent=0 // loop_body
    %s19 = ssub.s32 %s14, 1
    %s20 = ssub.s32 %s14, 2
    %s21 = sadd.s32 %s14, 1
    %s22 = ssub.s32 %s14, %s21
    %p23 = scmp.eq.s32.totalorder %s22, 0
    %s25 = sadd.s32 %s24, 1
    %s26 = scalar_select %p23, %s24, %s25
    %p29 = pneg %p23
    %p30 = scmp.eq.s32.totalorder %s14, 1
    %p31 = por %p29, %p30
    %p32 = scmp.ne.s32.totalorder %s24, %s27
    %p33 = scmp.eq.s32.totalorder %s14, 0
    %p34 = por %p32, %p33
    %p35 = scmp.ne.s32.totalorder %s24, %s27
    %p36 = scmp.eq.s32.totalorder %s19, 1
    %p37 = por %p35, %p36
    %p38 = scmp.ne.s32.totalorder %s27, %s28
    %p39 = scmp.eq.s32.totalorder %s19, 0
    %p40 = por %p38, %p39
    %p41 = scmp.ne.s32.totalorder %s27, %s28
    %p42 = scmp.eq.s32.totalorder %s20, 1
    %p43 = por %p41, %p42
    %p45 = scmp.ne.s32.totalorder %s28, %s44
    %p46 = scmp.eq.s32.totalorder %s20, 0
    %p47 = por %p45, %p46
    %s49 = sadd.s32 %s48, 1
    %p52 = scmp.eq.s32.totalorder %s14, 1
    %p53 = scmp.ne.s32.totalorder %s48, %s50
    %p54 = scmp.eq.s32.totalorder %s14, 0
    %p55 = por %p53, %p54
    %p56 = scmp.ne.s32.totalorder %s48, %s50
    %p57 = scmp.eq.s32.totalorder %s19, 1
    %p58 = por %p56, %p57
    %p59 = scmp.ne.s32.totalorder %s50, %s51
    %p60 = scmp.eq.s32.totalorder %s19, 0
    %p61 = por %p59, %p60
    %p62 = scmp.ne.s32.totalorder %s50, %s51
    %p63 = scmp.eq.s32.totalorder %s20, 1
    %p64 = por %p62, %p63
    %p66 = scmp.ne.s32.totalorder %s51, %s65
    %p67 = scmp.eq.s32.totalorder %s20, 0
    %p68 = por %p66, %p67
    %s70 = sadd.s32 %s69, 1
    %p73 = scmp.eq.s32.totalorder %s14, 1
    %p74 = scmp.ne.s32.totalorder %s69, %s71
    %p75 = scmp.eq.s32.totalorder %s14, 0
    %p76 = por %p74, %p75
    %p77 = scmp.ne.s32.totalorder %s69, %s71
    %p78 = scmp.eq.s32.totalorder %s19, 1
    %p79 = por %p77, %p78
    %p80 = scmp.ne.s32.totalorder %s71, %s72
    %p81 = scmp.eq.s32.totalorder %s19, 0
    %p82 = por %p80, %p81
    %p83 = scmp.ne.s32.totalorder %s71, %s72
    %p84 = scmp.eq.s32.totalorder %s20, 1
    %p85 = por %p83, %p84
    %p87 = scmp.ne.s32.totalorder %s72, %s86
    %p88 = scmp.eq.s32.totalorder %s20, 0
    %p89 = por %p87, %p88
    %s91 = sadd.s32 %s90, 1
    %p94 = scmp.eq.s32.totalorder %s14, 1
    %p95 = scmp.ne.s32.totalorder %s90, %s92
    %p96 = scmp.eq.s32.totalorder %s14, 0
    %p97 = por %p95, %p96
    %p98 = scmp.ne.s32.totalorder %s90, %s92
    %p99 = scmp.eq.s32.totalorder %s19, 1
    %p100 = por %p98, %p99
    %p101 = scmp.ne.s32.totalorder %s92, %s93
    %p102 = scmp.eq.s32.totalorder %s19, 0
    %p103 = por %p101, %p102
    %p104 = scmp.ne.s32.totalorder %s92, %s93
    %p105 = scmp.eq.s32.totalorder %s20, 1
    %p106 = por %p104, %p105
    %p108 = scmp.ne.s32.totalorder %s93, %s107
    %p109 = scmp.eq.s32.totalorder %s20, 0
    %p110 = por %p108, %p109
    %s112 = sadd.s32 %s111, 1
    %p115 = scmp.eq.s32.totalorder %s14, 1
    %p116 = scmp.ne.s32.totalorder %s111, %s113
    %p117 = scmp.eq.s32.totalorder %s14, 0
    %p118 = por %p116, %p117
    %p119 = scmp.ne.s32.totalorder %s111, %s113
    %p120 = scmp.eq.s32.totalorder %s19, 1
    %p121 = por %p119, %p120
    %p122 = scmp.ne.s32.totalorder %s113, %s114
    %p123 = scmp.eq.s32.totalorder %s19, 0
    %p124 = por %p122, %p123
    %p125 = scmp.ne.s32.totalorder %s113, %s114
    %p126 = scmp.eq.s32.totalorder %s20, 1
    %p127 = por %p125, %p126
    %p129 = scmp.ne.s32.totalorder %s114, %s128
    %p130 = scmp.eq.s32.totalorder %s20, 0
    %p131 = por %p129, %p130
    %s133 = sadd.s32 %s132, 1
    %p136 = scmp.eq.s32.totalorder %s14, 1
    %p137 = scmp.ne.s32.totalorder %s132, %s134
    %p138 = scmp.eq.s32.totalorder %s14, 0
    %p139 = por %p137, %p138
    %p140 = scmp.ne.s32.totalorder %s132, %s134
    %p141 = scmp.eq.s32.totalorder %s19, 1
    %p142 = por %p140, %p141
    %p143 = scmp.ne.s32.totalorder %s134, %s135
    %p144 = scmp.eq.s32.totalorder %s19, 0
    %p145 = por %p143, %p144
    %p146 = scmp.ne.s32.totalorder %s134, %s135
    %p147 = scmp.eq.s32.totalorder %s20, 1
    %p148 = por %p146, %p147
    %p150 = scmp.ne.s32.totalorder %s135, %s149
    %p151 = scmp.eq.s32.totalorder %s20, 0
    %p152 = por %p150, %p151
    %s154 = sadd.s32 %s153, 1
    %p157 = scmp.eq.s32.totalorder %s14, 1
    %p158 = scmp.ne.s32.totalorder %s153, %s155
    %p159 = scmp.eq.s32.totalorder %s14, 0
    %p160 = por %p158, %p159
    %p161 = scmp.ne.s32.totalorder %s153, %s155
    %p162 = scmp.eq.s32.totalorder %s19, 1
    %p163 = por %p161, %p162
    %p164 = scmp.ne.s32.totalorder %s155, %s156
    %p165 = scmp.eq.s32.totalorder %s19, 0
    %p166 = por %p164, %p165
    %p167 = scmp.ne.s32.totalorder %s155, %s156
    %p168 = scmp.eq.s32.totalorder %s20, 1
    %p169 = por %p167, %p168
    %p171 = scmp.ne.s32.totalorder %s156, %s170
    %p172 = scmp.eq.s32.totalorder %s20, 0
    %p173 = por %p171, %p172
    %s175 = sadd.s32 %s174, 1
    %p178 = scmp.eq.s32.totalorder %s14, 1
    %p179 = scmp.ne.s32.totalorder %s174, %s176
    %p180 = scmp.eq.s32.totalorder %s14, 0
    %p181 = por %p179, %p180
    %p182 = scmp.ne.s32.totalorder %s174, %s176
    %p183 = scmp.eq.s32.totalorder %s19, 1
    %p184 = por %p182, %p183
    %p185 = scmp.ne.s32.totalorder %s176, %s177
    %p186 = scmp.eq.s32.totalorder %s19, 0
    %p187 = por %p185, %p186
    %p188 = scmp.ne.s32.totalorder %s176, %s177
    %p189 = scmp.eq.s32.totalorder %s20, 1
    %p190 = por %p188, %p189
    %p192 = scmp.ne.s32.totalorder %s177, %s191
    %p193 = scmp.eq.s32.totalorder %s20, 0
    %p194 = por %p192, %p193
    %s195 = ssub.s32 %s14, %s21
    %p196 = scmp.eq.s32.totalorder %s195, 0
    %s198 = sadd.s32 %s197, 1
    %s199 = scalar_select %p196, %s197, %s198
    %p202 = pneg %p196
    %p203 = scmp.eq.s32.totalorder %s14, 1
    %p204 = por %p202, %p203
    %p205 = scmp.ne.s32.totalorder %s197, %s200
    %p206 = scmp.eq.s32.totalorder %s14, 0
    %p207 = por %p205, %p206
    %p208 = scmp.ne.s32.totalorder %s197, %s200
    %p209 = scmp.eq.s32.totalorder %s19, 1
    %p210 = por %p208, %p209
    %p211 = scmp.ne.s32.totalorder %s200, %s201
    %p212 = scmp.eq.s32.totalorder %s19, 0
    %p213 = por %p211, %p212
    %p214 = scmp.ne.s32.totalorder %s200, %s201
    %p215 = scmp.eq.s32.totalorder %s20, 1
    %p216 = por %p214, %p215
    %p218 = scmp.ne.s32.totalorder %s201, %s217
    %p219 = scmp.eq.s32.totalorder %s20, 0
    %p220 = por %p218, %p219
    %p221 = scmp.le.s32.totalorder 1, %s14
    %p222 = scmp.lt.s32.totalorder %s14, 3
    %p223 = pnand %p221, %p222
    %p224 = pneg %p223
    // Predicated region
    $region9: #{simple_net_forward.1} parent=5 // pred_check
      _
    $region10: #{simple_net_forward.1} parent=5 // pred_check_branch
      %226 = sbr.rel (%p223) target = $region12
    $region11: #{simple_net_forward.1} parent=5 // pred_region
      %s227 = ssub.s32 %s14, 1
      // Predicated region
      $region13: #{simple_net_forward.1} parent=11 // pred_check
        %p228 = pneg %p61
      $region14: #{simple_net_forward.1} parent=11 // pred_check_branch
        %230 = sbr.rel (%p228) target = $region16
      $region15: #{simple_net_forward.1} parent=11 // pred_region
        _
      $region16: #{simple_net_forward.1} parent=11 // pred_fallthru
        _
      // Predicated region
      $region17: #{simple_net_forward.1} parent=11 // pred_check
        %p231 = pneg %p82
      $region18: #{simple_net_forward.1} parent=11 // pred_check_branch
        %233 = sbr.rel (%p231) target = $region20
      $region19: #{simple_net_forward.1} parent=11 // pred_region
        _
      $region20: #{simple_net_forward.1} parent=11 // pred_fallthru
        _
      // Predicated region
      $region21: #{simple_net_forward.1} parent=11 // pred_check
        %p234 = pneg %p103
      $region22: #{simple_net_forward.1} parent=11 // pred_check_branch
        %236 = sbr.rel (%p234) target = $region24
      $region23: #{simple_net_forward.1} parent=11 // pred_region
        _
      $region24: #{simple_net_forward.1} parent=11 // pred_fallthru
        _
      // Predicated region
      $region25: #{simple_net_forward.1} parent=11 // pred_check
        %p237 = pneg %p124
      $region26: #{simple_net_forward.1} parent=11 // pred_check_branch
        %239 = sbr.rel (%p237) target = $region28
      $region27: #{simple_net_forward.1} parent=11 // pred_region
        _
      $region28: #{simple_net_forward.1} parent=11 // pred_fallthru
        _
      // Predicated region
      $region29: #{simple_net_forward.1} parent=11 // pred_check
        %p240 = pneg %p145
      $region30: #{simple_net_forward.1} parent=11 // pred_check_branch
        %242 = sbr.rel (%p240) target = $region32
      $region31: #{simple_net_forward.1} parent=11 // pred_region
        _
      $region32: #{simple_net_forward.1} parent=11 // pred_fallthru
        _
      // Predicated region
      $region33: #{simple_net_forward.1} parent=11 // pred_check
        %p243 = pneg %p166
      $region34: #{simple_net_forward.1} parent=11 // pred_check_branch
        %245 = sbr.rel (%p243) target = $region36
      $region35: #{simple_net_forward.1} parent=11 // pred_region
        _
      $region36: #{simple_net_forward.1} parent=11 // pred_fallthru
        _
      // Predicated region
      $region37: #{simple_net_forward.1} parent=11 // pred_check
        %p246 = pneg %p187
      $region38: #{simple_net_forward.1} parent=11 // pred_check_branch
        %248 = sbr.rel (%p246) target = $region40
      $region39: #{simple_net_forward.1} parent=11 // pred_region
        _
      $region40: #{simple_net_forward.1} parent=11 // pred_fallthru
        _
    $region12: #{simple_net_forward.1} parent=5 // pred_fallthru
      _
    %p249 = scmp.lt.s32.totalorder %s14, 2
    // Predicated region
    $region41: #{simple_net_forward.1} parent=5 // pred_check
      %p250 = pneg %p249
    $region42: #{simple_net_forward.1} parent=5 // pred_check_branch
      %252 = sbr.rel (%p250) target = $region44
    $region43: #{simple_net_forward.1} parent=5 // pred_region
      // Predicated region
      $region45: #{simple_net_forward.1} parent=43 // pred_check
        %p253 = pneg %p34
      $region46: #{simple_net_forward.1} parent=43 // pred_check_branch
        %255 = sbr.rel (%p253) target = $region48
      $region47: #{simple_net_forward.1} parent=43 // pred_region
        %p256 = scmp.lt.s32.totalorder %s14, 1
        %s257 = scalar_select %p256, %s14, 1
        %s258 = smul.addr %s257, 10
        %s259 = smul.addr %s258, 4
        %s260 = scalar_lea.vmem %s0, %s259
      $region48: #{simple_net_forward.1} parent=43 // pred_fallthru
        _
    $region44: #{simple_net_forward.1} parent=5 // pred_fallthru
      _
    %p261 = scmp.le.s32.totalorder 1, %s14
    %p262 = scmp.lt.s32.totalorder %s14, 3
    %p263 = pnand %p261, %p262
    %p264 = pneg %p263
    // Predicated region
    $region49: #{simple_net_forward.1} parent=5 // pred_check
      _
    $region50: #{simple_net_forward.1} parent=5 // pred_check_branch
      %266 = sbr.rel (%p263) target = $region52
    $region51: #{simple_net_forward.1} parent=5 // pred_region
      %s267 = ssub.s32 %s14, 1
      %p268 = scmp.lt.s32.totalorder %s19, 1
      %s269 = scalar_select %p268, %s19, 1
      %s270 = smul.addr %s269, 10
      %s271 = smul.addr %s270, 4
      %s272 = scalar_lea.vmem %s0, %s271
      %p273 = pneg %p40
      %p274 = pneg %p37
      %p275 = pneg %p61
      %p276 = pneg %p58
      %p277 = pneg %p82
      %p278 = pneg %p79
      %p279 = pneg %p103
      %p280 = pneg %p100
      %p281 = pneg %p124
      %p282 = pneg %p121
      %p283 = pneg %p145
      %p284 = pneg %p142
      %p285 = pneg %p166
      %p286 = pneg %p163
      %p287 = pneg %p187
      %p288 = pneg %p184
      %p289 = pneg %p213
      %p290 = pneg %p210
      %s291 = smul.u32 12, %s19
      %p292 = scmp.lt.s32.totalorder %s291, 23
      %s293 = scalar_select %p292, %s291, 23
      %s294 = smul.addr %s293, 4
      %s295 = scalar_lea.vmem %s8, %s294
      %p296 = scmp.lt.s32.totalorder %s19, 1
      %s297 = scalar_select %p296, %s19, 1
      %s298 = smul.addr %s297, 10
      %s299 = smul.addr %s298, 4
      %s300 = scalar_lea.vmem %s0, %s299
      %s301 = smul.u32 12, %s19
      %p302 = scmp.lt.s32.totalorder %s301, 23
      %s303 = scalar_select %p302, %s301, 23
      %s304 = smul.addr %s303, 4
      %s305 = scalar_lea.vmem %s8, %s304
      %s306 = smul.u32 12, %s19
      %v308 = vld [vmem:[%s1] sm:$0xf]
      %v309 = vld [vmem:[%s1 + $0x4] sm:$0xf]
      %v310 = vld [vmem:[%s1 + $0x8] sm:$0xf]
      %v311 = vld [vmem:[%s1 + $0xc] sm:$0xf]
      %v312 = vld [vmem:[%s1 + $0x10] sm:$0xf]
      %v313 = vld [vmem:[%s1 + $0x14] sm:$0xf]
      %v314 = vld [vmem:[%s1 + $0x18] sm:$0xf]
      %v315 = vld [vmem:[%s1 + $0x1c] sm:$0xf]
      %v316 = vld [vmem:[%s1 + $0x20] sm:$0xf]
      %v317 = vld [vmem:[%s1 + $0x24] sm:$0xf]
      %v318 = vld [vmem:[%s1 + $0x28] sm:$0xf]
      %v319 = vld [vmem:[%s1 + $0x2c] sm:$0xf]
      %v320 = vld [vmem:[%s300] sm:$0xf]
      %v321 = vld [vmem:[%s300 + $0x4] sm:$0xf]
      %v322 = vld [vmem:[%s300 + $0x8] sm:$0xf]
      %v323 = vld [vmem:[%s300 + $0xc] sm:$0xf]
      %v324 = vld [vmem:[%s300 + $0x10] sm:$0xf]
      %v325 = vld [vmem:[%s300 + $0x14] sm:$0xf]
      %v326 = vld [vmem:[%s300 + $0x18] sm:$0xf]
      %v327 = vld [vmem:[%s300 + $0x1c] sm:$0xf]
      %v328 = vld [vmem:[%s300 + $0x20] sm:$0xf]
      %v329 = vld [vmem:[%s300 + $0x24] sm:$0xf]
      %v342 = vunpack.c.l.b16 %v308
      %v343 = vunpack.c.l.b16 %v309
      %v344 = vunpack.c.l.b16 %v310
      %v345 = vunpack.c.l.b16 %v311
      %v346 = vunpack.c.l.b16 %v312
      %v347 = vunpack.c.l.b16 %v313
      %v348 = vunpack.c.l.b16 %v314
      %v349 = vunpack.c.l.b16 %v315
      %v350 = vunpack.c.l.b16 %v316
      %v351 = vunpack.c.l.b16 %v317
      %v352 = vunpack.c.l.b16 %v318
      %v353 = vunpack.c.l.b16 %v319
      %v354 = vpack.c.b16 %v343, %v342
      %v355 = vpack.c.b16 %v345, %v344
      %v356 = vpack.c.b16 %v347, %v346
      %v357 = vpack.c.b16 %v349, %v348
      %v358 = vpack.c.b16 %v351, %v350
      %v359 = vpack.c.b16 %v353, %v352
      %v370 = vunpack.c.l.b16 %v320
      %v371 = vunpack.c.l.b16 %v321
      %v372 = vunpack.c.l.b16 %v322
      %v373 = vunpack.c.l.b16 %v323
      %v374 = vunpack.c.l.b16 %v324
      %v375 = vunpack.c.l.b16 %v325
      %v376 = vunpack.c.l.b16 %v326
      %v377 = vunpack.c.l.b16 %v327
      %v378 = vunpack.c.l.b16 %v328
      %v379 = vunpack.c.l.b16 %v329
      %v380 = vpack.c.b16 %v371, %v370
      %v381 = vpack.c.b16 %v373, %v372
      %v382 = vpack.c.b16 %v375, %v374
      %v383 = vpack.c.b16 %v377, %v376
      %v384 = vpack.c.b16 %v379, %v378
      %vm390 = vcmask 654336
      %v392 = vsel %vm390, %v354, 0
      %v395 = vsel %vm390, %v355, 0
      %v398 = vsel %vm390, %v356, 0
      %v401 = vsel %vm390, %v357, 0
      %v404 = vsel %vm390, %v358, 0
      %v407 = vsel %vm390, %v359, 0
      %409 = vmatprep.subr.bf16.mxu0 0
      %410 = vmatpush1.bf16.msra.mxu0 %v380
      %411 = vmatprep.subr.bf16.mxu0 0
      %412 = vmatpush1.bf16.msra.mxu0 %v381
      %413 = vmatprep.subr.bf16.mxu0 0
      %414 = vmatpush1.bf16.msra.mxu0 %v382
      %415 = vmatprep.subr.bf16.mxu0 0
      %416 = vmatpush1.bf16.msra.mxu0 %v383
      %417 = vmatprep.subr.bf16.mxu0 0
      %418 = vmatpush1.bf16.msra.mxu0 %v384
      %419 = vmatprep.subr.bf16.mxu0 0
      %420 = vmatpush1.bf16.msra.mxu0 0
      %421 = vmatprep.subr.bf16.mxu0 0
      %422 = vmatpush1.bf16.msra.mxu0 0
      %423 = vmatprep.subr.bf16.mxu0 0
      %424 = vmatpush1.bf16.msra.mxu0 0
      %425 = vmatprep.subr.bf16.mxu0 0
      %426 = vmatpush1.bf16.msra.mxu0 0
      %427 = vmatprep.subr.bf16.mxu0 0
      %428 = vmatpush1.bf16.msra.mxu0 0
      %429 = vmatprep.subr.bf16.mxu0 0
      %430 = vmatpush1.bf16.msra.mxu0 0
      %431 = vmatprep.subr.bf16.mxu0 0
      %432 = vmatpush1.bf16.msra.mxu0 0
      %433 = vmatprep.subr.bf16.mxu0 0
      %434 = vmatpush1.bf16.msra.mxu0 0
      %435 = vmatprep.subr.bf16.mxu0 0
      %436 = vmatpush1.bf16.msra.mxu0 0
      %437 = vmatprep.subr.bf16.mxu0 0
      %438 = vmatpush1.bf16.msra.mxu0 0
      %439 = vmatprep.subr.bf16.mxu0 0
      %440 = vmatpush1.bf16.msra.mxu0 0
      %441 = vmatprep.mubr.bf16.mxu0 0
      %442 = vmatmul.mubr.bf16.gmra.mrb[0].mxu0 %v392
      %v443 = vpop.f32.mrb[0].mxu0
      %v444 = vadd.f32 0.0, %v443
      %v445 = vpop.f32.mrb[0].mxu0
      %v446 = vpop.f32.mrb[0].mxu0
      %v447 = vadd.f32 0.0, %v446
      %v448 = vpop.f32.mrb[0].mxu0
      %449 = vmatprep.mubr.bf16.mxu0 0
      %450 = vmatmul.mubr.bf16.gmra.mrb[0].mxu0 %v395
      %v451 = vpop.f32.mrb[0].mxu0
      %v452 = vadd.f32 0.0, %v451
      %v453 = vpop.f32.mrb[0].mxu0
      %v454 = vpop.f32.mrb[0].mxu0
      %v455 = vadd.f32 0.0, %v454
      %v456 = vpop.f32.mrb[0].mxu0
      %457 = vmatprep.mubr.bf16.mxu0 0
      %458 = vmatmul.mubr.bf16.gmra.mrb[0].mxu0 %v398
      %v459 = vpop.f32.mrb[0].mxu0
      %v460 = vadd.f32 0.0, %v459
      %v461 = vpop.f32.mrb[0].mxu0
      %v462 = vpop.f32.mrb[0].mxu0
      %v463 = vadd.f32 0.0, %v462
      %v464 = vpop.f32.mrb[0].mxu0
      %465 = vmatprep.mubr.bf16.mxu0 0
      %466 = vmatmul.mubr.bf16.gmra.mrb[0].mxu0 %v401
      %v467 = vpop.f32.mrb[0].mxu0
      %v468 = vadd.f32 0.0, %v467
      %v469 = vpop.f32.mrb[0].mxu0
      %v470 = vpop.f32.mrb[0].mxu0
      %v471 = vadd.f32 0.0, %v470
      %v472 = vpop.f32.mrb[0].mxu0
      %473 = vmatprep.mubr.bf16.mxu0 0
      %474 = vmatmul.mubr.bf16.gmra.mrb[0].mxu0 %v404
      %v475 = vpop.f32.mrb[0].mxu0
      %v476 = vadd.f32 0.0, %v475
      %v477 = vpop.f32.mrb[0].mxu0
      %v478 = vpop.f32.mrb[0].mxu0
      %v479 = vadd.f32 0.0, %v478
      %v480 = vpop.f32.mrb[0].mxu0
      %481 = vmatprep.mubr.bf16.mxu0 0
      %482 = vmatmul.mubr.bf16.gmra.mrb[0].mxu0 %v407
      %v483 = vpop.f32.mrb[0].mxu0
      %v484 = vadd.f32 0.0, %v483
      %v485 = vpop.f32.mrb[0].mxu0
      %v486 = vpop.f32.mrb[0].mxu0
      %v487 = vadd.f32 0.0, %v486
      %v488 = vpop.f32.mrb[0].mxu0
      %489 = vdwg.mxu0
      %v490 = vpack.c.bf16 %v447, %v444
      %v491 = vpack.c.bf16 %v455, %v452
      %v492 = vpack.c.bf16 %v463, %v460
      %v493 = vpack.c.bf16 %v471, %v468
      %v494 = vpack.c.bf16 %v479, %v476
      %v495 = vpack.c.bf16 %v487, %v484
      %496 = vst [vmem:[#allocation2] sm:$0xff] %v490
      %497 = vst [vmem:[#allocation2 + $0x8] sm:$0xff] %v491
      %498 = vst [vmem:[#allocation2 + $0x10] sm:$0xff] %v492
      %499 = vst [vmem:[#allocation2 + $0x18] sm:$0xff] %v493
      %500 = vst [vmem:[#allocation2 + $0x20] sm:$0xff] %v494
      %501 = vst [vmem:[#allocation2 + $0x28] sm:$0xff] %v495
      %v502 = vld [vmem:[#allocation2] sm:$0xff]
      %v503 = vld [vmem:[#allocation2 + $0x8] sm:$0xff]
      %v504 = vld [vmem:[#allocation2 + $0x10] sm:$0xff]
      %v505 = vld [vmem:[#allocation2 + $0x18] sm:$0xff]
      %v506 = vld [vmem:[#allocation2 + $0x20] sm:$0xff]
      %v507 = vld [vmem:[#allocation2 + $0x28] sm:$0xff]
      %v508 = vld [vmem:[%s2] sm:$0xf]
      %v509 = vld [vmem:[%s2 + $0x4] sm:$0xf]
      %v510 = vld [vmem:[%s2 + $0x8] sm:$0xf]
      %v511 = vld [vmem:[%s2 + $0xc] sm:$0xf]
      %v512 = vld [vmem:[%s2 + $0x10] sm:$0xf]
      %v513 = vld [vmem:[%s2 + $0x14] sm:$0xf]
      %v514 = vld [vmem:[%s2 + $0x18] sm:$0xf]
      %v515 = vld [vmem:[%s2 + $0x1c] sm:$0xf]
      %v516 = vld [vmem:[%s2 + $0x20] sm:$0xf]
      %v517 = vld [vmem:[%s2 + $0x24] sm:$0xf]
      %v518 = vld [vmem:[%s2 + $0x28] sm:$0xf]
      %v519 = vld [vmem:[%s2 + $0x2c] sm:$0xf]
      %v520 = vld [vmem:[%s2 + $0x30] sm:$0xf]
      %v521 = vld [vmem:[%s2 + $0x34] sm:$0xf]
      %v522 = vld [vmem:[%s2 + $0x38] sm:$0xf]
      %v523 = vld [vmem:[%s2 + $0x3c] sm:$0xf]
      %v524 = vld [vmem:[%s3] sm:$0x1]
      %v526 = vlaneseq
      %v527 = vshrl.u32 %v526, 7
      %v528 = vsub.s32 0, %v527
      %v529 = vrot.slane %v524, %v528
      %v547 = vunpack.c.l.b16 %v508
      %v548 = vunpack.c.l.b16 %v509
      %v549 = vunpack.c.l.b16 %v510
      %v550 = vunpack.c.l.b16 %v511
      %v551 = vunpack.c.l.b16 %v512
      %v552 = vunpack.c.l.b16 %v513
      %v553 = vunpack.c.l.b16 %v514
      %v554 = vunpack.c.l.b16 %v515
      %v555 = vunpack.c.l.b16 %v516
      %v556 = vunpack.c.l.b16 %v517
      %v557 = vunpack.c.l.b16 %v518
      %v558 = vunpack.c.l.b16 %v519
      %v559 = vunpack.c.l.b16 %v520
      %v560 = vunpack.c.l.b16 %v521
      %v561 = vunpack.c.l.b16 %v522
      %v562 = vunpack.c.l.b16 %v523
      %v563 = vpack.c.b16 %v548, %v547
      %v564 = vpack.c.b16 %v550, %v549
      %v565 = vpack.c.b16 %v552, %v551
      %v566 = vpack.c.b16 %v554, %v553
      %v567 = vpack.c.b16 %v556, %v555
      %v568 = vpack.c.b16 %v558, %v557
      %v569 = vpack.c.b16 %v560, %v559
      %v570 = vpack.c.b16 %v562, %v561
      %579 = vmatprep.subr.bf16.mxu0 0
      %580 = vmatpush1.bf16.msra.mxu0 %v563
      %581 = vmatprep.subr.bf16.mxu0 0
      %582 = vmatpush1.bf16.msra.mxu0 %v564
      %583 = vmatprep.subr.bf16.mxu0 0
      %584 = vmatpush1.bf16.msra.mxu0 %v565
      %585 = vmatprep.subr.bf16.mxu0 0
      %586 = vmatpush1.bf16.msra.mxu0 %v566
      %587 = vmatprep.subr.bf16.mxu0 0
      %588 = vmatpush1.bf16.msra.mxu0 %v567
      %589 = vmatprep.subr.bf16.mxu0 0
      %590 = vmatpush1.bf16.msra.mxu0 %v568
      %591 = vmatprep.subr.bf16.mxu0 0
      %592 = vmatpush1.bf16.msra.mxu0 %v569
      %593 = vmatprep.subr.bf16.mxu0 0
      %594 = vmatpush1.bf16.msra.mxu0 %v570
      %595 = vmatprep.subr.bf16.mxu0 0
      %596 = vmatpush1.bf16.msra.mxu0 0
      %597 = vmatprep.subr.bf16.mxu0 0
      %598 = vmatpush1.bf16.msra.mxu0 0
      %599 = vmatprep.subr.bf16.mxu0 0
      %600 = vmatpush1.bf16.msra.mxu0 0
      %601 = vmatprep.subr.bf16.mxu0 0
      %602 = vmatpush1.bf16.msra.mxu0 0
      %603 = vmatprep.subr.bf16.mxu0 0
      %604 = vmatpush1.bf16.msra.mxu0 0
      %605 = vmatprep.subr.bf16.mxu0 0
      %606 = vmatpush1.bf16.msra.mxu0 0
      %607 = vmatprep.subr.bf16.mxu0 0
      %608 = vmatpush1.bf16.msra.mxu0 0
      %609 = vmatprep.subr.bf16.mxu0 0
      %610 = vmatpush1.bf16.msra.mxu0 0
      %611 = vmatprep.mubr.bf16.mxu0 0
      %612 = vmatmul.mubr.bf16.gmra.mrb[0].mxu0 %v502
      %v613 = vpop.f32.mrb[0].mxu0
      %v614 = vadd.f32 %v529, %v613
      %v615 = vpop.f32.mrb[0].mxu0
      %v616 = vpop.f32.mrb[0].mxu0
      %v617 = vadd.f32 %v529, %v616
      %v618 = vpop.f32.mrb[0].mxu0
      %619 = vmatprep.mubr.bf16.mxu0 0
      %620 = vmatmul.mubr.bf16.gmra.mrb[0].mxu0 %v503
      %v621 = vpop.f32.mrb[0].mxu0
      %v622 = vadd.f32 %v529, %v621
      %v623 = vpop.f32.mrb[0].mxu0
      %v624 = vpop.f32.mrb[0].mxu0
      %v625 = vadd.f32 %v529, %v624
      %v626 = vpop.f32.mrb[0].mxu0
      %627 = vmatprep.mubr.bf16.mxu0 0
      %628 = vmatmul.mubr.bf16.gmra.mrb[0].mxu0 %v504
      %v629 = vpop.f32.mrb[0].mxu0
      %v630 = vadd.f32 %v529, %v629
      %v631 = vpop.f32.mrb[0].mxu0
      %v632 = vpop.f32.mrb[0].mxu0
      %v633 = vadd.f32 %v529, %v632
      %v634 = vpop.f32.mrb[0].mxu0
      %635 = vmatprep.mubr.bf16.mxu0 0
      %636 = vmatmul.mubr.bf16.gmra.mrb[0].mxu0 %v505
      %v637 = vpop.f32.mrb[0].mxu0
      %v638 = vadd.f32 %v529, %v637
      %v639 = vpop.f32.mrb[0].mxu0
      %v640 = vpop.f32.mrb[0].mxu0
      %v641 = vadd.f32 %v529, %v640
      %v642 = vpop.f32.mrb[0].mxu0
      %643 = vmatprep.mubr.bf16.mxu0 0
      %644 = vmatmul.mubr.bf16.gmra.mrb[0].mxu0 %v506
      %v645 = vpop.f32.mrb[0].mxu0
      %v646 = vadd.f32 %v529, %v645
      %v647 = vpop.f32.mrb[0].mxu0
      %v648 = vpop.f32.mrb[0].mxu0
      %v649 = vadd.f32 %v529, %v648
      %v650 = vpop.f32.mrb[0].mxu0
      %651 = vmatprep.mubr.bf16.mxu0 0
      %652 = vmatmul.mubr.bf16.gmra.mrb[0].mxu0 %v507
      %v653 = vpop.f32.mrb[0].mxu0
      %v654 = vadd.f32 %v529, %v653
      %v655 = vpop.f32.mrb[0].mxu0
      %v656 = vpop.f32.mrb[0].mxu0
      %v657 = vadd.f32 %v529, %v656
      %v658 = vpop.f32.mrb[0].mxu0
      %659 = vdwg.mxu0
      %v660 = vmax.f32 %v614, 0.0
      %v661 = vmax.f32 %v617, 0.0
      %v662 = vmax.f32 %v622, 0.0
      %v663 = vmax.f32 %v625, 0.0
      %v664 = vmax.f32 %v630, 0.0
      %v665 = vmax.f32 %v633, 0.0
      %v666 = vmax.f32 %v638, 0.0
      %v667 = vmax.f32 %v641, 0.0
      %v668 = vmax.f32 %v646, 0.0
      %v669 = vmax.f32 %v649, 0.0
      %v670 = vmax.f32 %v654, 0.0
      %v671 = vmax.f32 %v657, 0.0
      %v672 = vpack.c.bf16 %v661, %v660
      %v673 = vpack.c.bf16 %v663, %v662
      %v674 = vpack.c.bf16 %v665, %v664
      %v675 = vpack.c.bf16 %v667, %v666
      %v676 = vpack.c.bf16 %v669, %v668
      %v677 = vpack.c.bf16 %v671, %v670
      %v678 = vld [vmem:[%s4] sm:$0xf]
      %v679 = vld [vmem:[%s4 + $0x4] sm:$0xf]
      %v680 = vld [vmem:[%s4 + $0x8] sm:$0xf]
      %v681 = vld [vmem:[%s4 + $0xc] sm:$0xf]
      %v682 = vld [vmem:[%s4 + $0x10] sm:$0xf]
      %v683 = vld [vmem:[%s4 + $0x14] sm:$0xf]
      %v684 = vld [vmem:[%s4 + $0x18] sm:$0xf]
      %v685 = vld [vmem:[%s4 + $0x1c] sm:$0xf]
      %v686 = vld [vmem:[%s4 + $0x20] sm:$0xf]
      %v687 = vld [vmem:[%s4 + $0x24] sm:$0xf]
      %v688 = vld [vmem:[%s4 + $0x28] sm:$0xf]
      %v689 = vld [vmem:[%s4 + $0x2c] sm:$0xf]
      %v690 = vld [vmem:[%s4 + $0x30] sm:$0xf]
      %v691 = vld [vmem:[%s4 + $0x34] sm:$0xf]
      %v692 = vld [vmem:[%s4 + $0x38] sm:$0xf]
      %v693 = vld [vmem:[%s4 + $0x3c] sm:$0xf]
      %v694 = vld [vmem:[%s5] sm:$0x1]
      %v696 = vlaneseq
      %v697 = vshrl.u32 %v696, 7
      %v698 = vsub.s32 0, %v697
      %v699 = vrot.slane %v694, %v698
      %v717 = vunpack.c.l.b16 %v678
      %v718 = vunpack.c.l.b16 %v679
      %v719 = vunpack.c.l.b16 %v680
      %v720 = vunpack.c.l.b16 %v681
      %v721 = vunpack.c.l.b16 %v682
      %v722 = vunpack.c.l.b16 %v683
      %v723 = vunpack.c.l.b16 %v684
      %v724 = vunpack.c.l.b16 %v685
      %v725 = vunpack.c.l.b16 %v686
      %v726 = vunpack.c.l.b16 %v687
      %v727 = vunpack.c.l.b16 %v688
      %v728 = vunpack.c.l.b16 %v689
      %v729 = vunpack.c.l.b16 %v690
      %v730 = vunpack.c.l.b16 %v691
      %v731 = vunpack.c.l.b16 %v692
      %v732 = vunpack.c.l.b16 %v693
      %v733 = vpack.c.b16 %v718, %v717
      %v734 = vpack.c.b16 %v720, %v719
      %v735 = vpack.c.b16 %v722, %v721
      %v736 = vpack.c.b16 %v724, %v723
      %v737 = vpack.c.b16 %v726, %v725
      %v738 = vpack.c.b16 %v728, %v727
      %v739 = vpack.c.b16 %v730, %v729
      %v740 = vpack.c.b16 %v732, %v731
      %749 = vmatprep.subr.bf16.mxu0 0
      %750 = vmatpush1.bf16.msra.mxu0 %v733
      %751 = vmatprep.subr.bf16.mxu0 0
      %752 = vmatpush1.bf16.msra.mxu0 %v734
      %753 = vmatprep.subr.bf16.mxu0 0
      %754 = vmatpush1.bf16.msra.mxu0 %v735
      %755 = vmatprep.subr.bf16.mxu0 0
      %756 = vmatpush1.bf16.msra.mxu0 %v736
      %757 = vmatprep.subr.bf16.mxu0 0
      %758 = vmatpush1.bf16.msra.mxu0 %v737
      %759 = vmatprep.subr.bf16.mxu0 0
      %760 = vmatpush1.bf16.msra.mxu0 %v738
      %761 = vmatprep.subr.bf16.mxu0 0
      %762 = vmatpush1.bf16.msra.mxu0 %v739
      %763 = vmatprep.subr.bf16.mxu0 0
      %764 = vmatpush1.bf16.msra.mxu0 %v740
      %765 = vmatprep.subr.bf16.mxu0 0
      %766 = vmatpush1.bf16.msra.mxu0 0
      %767 = vmatprep.subr.bf16.mxu0 0
      %768 = vmatpush1.bf16.msra.mxu0 0
      %769 = vmatprep.subr.bf16.mxu0 0
      %770 = vmatpush1.bf16.msra.mxu0 0
      %771 = vmatprep.subr.bf16.mxu0 0
      %772 = vmatpush1.bf16.msra.mxu0 0
      %773 = vmatprep.subr.bf16.mxu0 0
      %774 = vmatpush1.bf16.msra.mxu0 0
      %775 = vmatprep.subr.bf16.mxu0 0
      %776 = vmatpush1.bf16.msra.mxu0 0
      %777 = vmatprep.subr.bf16.mxu0 0
      %778 = vmatpush1.bf16.msra.mxu0 0
      %779 = vmatprep.subr.bf16.mxu0 0
      %780 = vmatpush1.bf16.msra.mxu0 0
      %781 = vmatprep.mubr.bf16.mxu0 0
      %782 = vmatmul.mubr.bf16.gmra.mrb[0].mxu0 %v672
      %v783 = vpop.f32.mrb[0].mxu0
      %v784 = vadd.f32 %v699, %v783
      %v785 = vpop.f32.mrb[0].mxu0
      %v786 = vpop.f32.mrb[0].mxu0
      %v787 = vadd.f32 %v699, %v786
      %v788 = vpop.f32.mrb[0].mxu0
      %789 = vmatprep.mubr.bf16.mxu0 0
      %790 = vmatmul.mubr.bf16.gmra.mrb[0].mxu0 %v673
      %v791 = vpop.f32.mrb[0].mxu0
      %v792 = vadd.f32 %v699, %v791
      %v793 = vpop.f32.mrb[0].mxu0
      %v794 = vpop.f32.mrb[0].mxu0
      %v795 = vadd.f32 %v699, %v794
      %v796 = vpop.f32.mrb[0].mxu0
      %797 = vmatprep.mubr.bf16.mxu0 0
      %798 = vmatmul.mubr.bf16.gmra.mrb[0].mxu0 %v674
      %v799 = vpop.f32.mrb[0].mxu0
      %v800 = vadd.f32 %v699, %v799
      %v801 = vpop.f32.mrb[0].mxu0
      %v802 = vpop.f32.mrb[0].mxu0
      %v803 = vadd.f32 %v699, %v802
      %v804 = vpop.f32.mrb[0].mxu0
      %805 = vmatprep.mubr.bf16.mxu0 0
      %806 = vmatmul.mubr.bf16.gmra.mrb[0].mxu0 %v675
      %v807 = vpop.f32.mrb[0].mxu0
      %v808 = vadd.f32 %v699, %v807
      %v809 = vpop.f32.mrb[0].mxu0
      %v810 = vpop.f32.mrb[0].mxu0
      %v811 = vadd.f32 %v699, %v810
      %v812 = vpop.f32.mrb[0].mxu0
      %813 = vmatprep.mubr.bf16.mxu0 0
      %814 = vmatmul.mubr.bf16.gmra.mrb[0].mxu0 %v676
      %v815 = vpop.f32.mrb[0].mxu0
      %v816 = vadd.f32 %v699, %v815
      %v817 = vpop.f32.mrb[0].mxu0
      %v818 = vpop.f32.mrb[0].mxu0
      %v819 = vadd.f32 %v699, %v818
      %v820 = vpop.f32.mrb[0].mxu0
      %821 = vmatprep.mubr.bf16.mxu0 0
      %822 = vmatmul.mubr.bf16.gmra.mrb[0].mxu0 %v677
      %v823 = vpop.f32.mrb[0].mxu0
      %v824 = vadd.f32 %v699, %v823
      %v825 = vpop.f32.mrb[0].mxu0
      %v826 = vpop.f32.mrb[0].mxu0
      %v827 = vadd.f32 %v699, %v826
      %v828 = vpop.f32.mrb[0].mxu0
      %829 = vdwg.mxu0
      %v830 = vmax.f32 %v784, 0.0
      %v831 = vmax.f32 %v787, 0.0
      %v832 = vmax.f32 %v792, 0.0
      %v833 = vmax.f32 %v795, 0.0
      %v834 = vmax.f32 %v800, 0.0
      %v835 = vmax.f32 %v803, 0.0
      %v836 = vmax.f32 %v808, 0.0
      %v837 = vmax.f32 %v811, 0.0
      %v838 = vmax.f32 %v816, 0.0
      %v839 = vmax.f32 %v819, 0.0
      %v840 = vmax.f32 %v824, 0.0
      %v841 = vmax.f32 %v827, 0.0
      %v842 = vpack.c.bf16 %v831, %v830
      %v843 = vpack.c.bf16 %v833, %v832
      %v844 = vpack.c.bf16 %v835, %v834
      %v845 = vpack.c.bf16 %v837, %v836
      %v846 = vpack.c.bf16 %v839, %v838
      %v847 = vpack.c.bf16 %v841, %v840
      %v848 = vld [vmem:[%s6] sm:$0xf]
      %v849 = vld [vmem:[%s6 + $0x4] sm:$0xf]
      %v850 = vld [vmem:[%s6 + $0x8] sm:$0xf]
      %v851 = vld [vmem:[%s6 + $0xc] sm:$0xf]
      %v852 = vld [vmem:[%s6 + $0x10] sm:$0xf]
      %v853 = vld [vmem:[%s6 + $0x14] sm:$0xf]
      %v854 = vld [vmem:[%s6 + $0x18] sm:$0xf]
      %v855 = vld [vmem:[%s6 + $0x1c] sm:$0xf]
      %v856 = vld [vmem:[%s6 + $0x20] sm:$0xf]
      %v857 = vld [vmem:[%s6 + $0x24] sm:$0xf]
      %v858 = vld [vmem:[%s6 + $0x28] sm:$0xf]
      %v859 = vld [vmem:[%s6 + $0x2c] sm:$0xf]
      %v860 = vld [vmem:[%s6 + $0x30] sm:$0xf]
      %v861 = vld [vmem:[%s6 + $0x34] sm:$0xf]
      %v862 = vld [vmem:[%s6 + $0x38] sm:$0xf]
      %v863 = vld [vmem:[%s6 + $0x3c] sm:$0xf]
      %v864 = vld [vmem:[%s7] sm:$0x1]
      %v866 = vlaneseq
      %v867 = vshrl.u32 %v866, 7
      %v868 = vsub.s32 0, %v867
      %v869 = vrot.slane %v864, %v868
      %v887 = vunpack.c.l.b16 %v848
      %v888 = vunpack.c.l.b16 %v849
      %v889 = vunpack.c.l.b16 %v850
      %v890 = vunpack.c.l.b16 %v851
      %v891 = vunpack.c.l.b16 %v852
      %v892 = vunpack.c.l.b16 %v853
      %v893 = vunpack.c.l.b16 %v854
      %v894 = vunpack.c.l.b16 %v855
      %v895 = vunpack.c.l.b16 %v856
      %v896 = vunpack.c.l.b16 %v857
      %v897 = vunpack.c.l.b16 %v858
      %v898 = vunpack.c.l.b16 %v859
      %v899 = vunpack.c.l.b16 %v860
      %v900 = vunpack.c.l.b16 %v861
      %v901 = vunpack.c.l.b16 %v862
      %v902 = vunpack.c.l.b16 %v863
      %v903 = vpack.c.b16 %v888, %v887
      %v904 = vpack.c.b16 %v890, %v889
      %v905 = vpack.c.b16 %v892, %v891
      %v906 = vpack.c.b16 %v894, %v893
      %v907 = vpack.c.b16 %v896, %v895
      %v908 = vpack.c.b16 %v898, %v897
      %v909 = vpack.c.b16 %v900, %v899
      %v910 = vpack.c.b16 %v902, %v901
      %919 = vmatprep.subr.bf16.mxu0 0
      %920 = vmatpush1.bf16.msra.mxu0 %v903
      %921 = vmatprep.subr.bf16.mxu0 0
      %922 = vmatpush1.bf16.msra.mxu0 %v904
      %923 = vmatprep.subr.bf16.mxu0 0
      %924 = vmatpush1.bf16.msra.mxu0 %v905
      %925 = vmatprep.subr.bf16.mxu0 0
      %926 = vmatpush1.bf16.msra.mxu0 %v906
      %927 = vmatprep.subr.bf16.mxu0 0
      %928 = vmatpush1.bf16.msra.mxu0 %v907
      %929 = vmatprep.subr.bf16.mxu0 0
      %930 = vmatpush1.bf16.msra.mxu0 %v908
      %931 = vmatprep.subr.bf16.mxu0 0
      %932 = vmatpush1.bf16.msra.mxu0 %v909
      %933 = vmatprep.subr.bf16.mxu0 0
      %934 = vmatpush1.bf16.msra.mxu0 %v910
      %935 = vmatprep.subr.bf16.mxu0 0
      %936 = vmatpush1.bf16.msra.mxu0 0
      %937 = vmatprep.subr.bf16.mxu0 0
      %938 = vmatpush1.bf16.msra.mxu0 0
      %939 = vmatprep.subr.bf16.mxu0 0
      %940 = vmatpush1.bf16.msra.mxu0 0
      %941 = vmatprep.subr.bf16.mxu0 0
      %942 = vmatpush1.bf16.msra.mxu0 0
      %943 = vmatprep.subr.bf16.mxu0 0
      %944 = vmatpush1.bf16.msra.mxu0 0
      %945 = vmatprep.subr.bf16.mxu0 0
      %946 = vmatpush1.bf16.msra.mxu0 0
      %947 = vmatprep.subr.bf16.mxu0 0
      %948 = vmatpush1.bf16.msra.mxu0 0
      %949 = vmatprep.subr.bf16.mxu0 0
      %950 = vmatpush1.bf16.msra.mxu0 0
      %951 = vmatprep.mubr.bf16.mxu0 0
      %952 = vmatmul.mubr.bf16.gmra.mrb[0].mxu0 %v842
      %v953 = vpop.f32.mrb[0].mxu0
      %v954 = vadd.f32 %v869, %v953
      %v955 = vpop.f32.mrb[0].mxu0
      %v956 = vpop.f32.mrb[0].mxu0
      %v957 = vadd.f32 %v869, %v956
      %v958 = vpop.f32.mrb[0].mxu0
      %959 = vmatprep.mubr.bf16.mxu0 0
      %960 = vmatmul.mubr.bf16.gmra.mrb[0].mxu0 %v843
      %v961 = vpop.f32.mrb[0].mxu0
      %v962 = vadd.f32 %v869, %v961
      %v963 = vpop.f32.mrb[0].mxu0
      %v964 = vpop.f32.mrb[0].mxu0
      %v965 = vadd.f32 %v869, %v964
      %v966 = vpop.f32.mrb[0].mxu0
      %967 = vmatprep.mubr.bf16.mxu0 0
      %968 = vmatmul.mubr.bf16.gmra.mrb[0].mxu0 %v844
      %v969 = vpop.f32.mrb[0].mxu0
      %v970 = vadd.f32 %v869, %v969
      %v971 = vpop.f32.mrb[0].mxu0
      %v972 = vpop.f32.mrb[0].mxu0
      %v973 = vadd.f32 %v869, %v972
      %v974 = vpop.f32.mrb[0].mxu0
      %975 = vmatprep.mubr.bf16.mxu0 0
      %976 = vmatmul.mubr.bf16.gmra.mrb[0].mxu0 %v845
      %v977 = vpop.f32.mrb[0].mxu0
      %v978 = vadd.f32 %v869, %v977
      %v979 = vpop.f32.mrb[0].mxu0
      %v980 = vpop.f32.mrb[0].mxu0
      %v981 = vadd.f32 %v869, %v980
      %v982 = vpop.f32.mrb[0].mxu0
      %983 = vmatprep.mubr.bf16.mxu0 0
      %984 = vmatmul.mubr.bf16.gmra.mrb[0].mxu0 %v846
      %v985 = vpop.f32.mrb[0].mxu0
      %v986 = vadd.f32 %v869, %v985
      %v987 = vpop.f32.mrb[0].mxu0
      %v988 = vpop.f32.mrb[0].mxu0
      %v989 = vadd.f32 %v869, %v988
      %v990 = vpop.f32.mrb[0].mxu0
      %991 = vmatprep.mubr.bf16.mxu0 0
      %992 = vmatmul.mubr.bf16.gmra.mrb[0].mxu0 %v847
      %v993 = vpop.f32.mrb[0].mxu0
      %v994 = vadd.f32 %v869, %v993
      %v995 = vpop.f32.mrb[0].mxu0
      %v996 = vpop.f32.mrb[0].mxu0
      %v997 = vadd.f32 %v869, %v996
      %v998 = vpop.f32.mrb[0].mxu0
      %999 = vdwg.mxu0
      %v1000 = vpack.c.bf16 %v957, %v954
      %v1001 = vpack.c.bf16 %v965, %v962
      %v1002 = vpack.c.bf16 %v973, %v970
      %v1003 = vpack.c.bf16 %v981, %v978
      %v1004 = vpack.c.bf16 %v989, %v986
      %v1005 = vpack.c.bf16 %v997, %v994
      %v1012 = vunpack.c.l.b16 %v1000
      %v1013 = vunpack.c.h.b16 %v1000
      %v1014 = vunpack.c.l.b16 %v1001
      %v1015 = vunpack.c.h.b16 %v1001
      %v1016 = vunpack.c.l.b16 %v1002
      %v1017 = vunpack.c.h.b16 %v1002
      %v1018 = vunpack.c.l.b16 %v1003
      %v1019 = vunpack.c.h.b16 %v1003
      %v1020 = vunpack.c.l.b16 %v1004
      %v1021 = vunpack.c.h.b16 %v1004
      %v1022 = vunpack.c.l.b16 %v1005
      %v1023 = vunpack.c.h.b16 %v1005
      %v1024 = vpack.c.b16 %v1012, %v1012
      %v1025 = vpack.c.b16 %v1013, %v1013
      %v1026 = vpack.c.b16 %v1014, %v1014
      %v1027 = vpack.c.b16 %v1015, %v1015
      %v1028 = vpack.c.b16 %v1016, %v1016
      %v1029 = vpack.c.b16 %v1017, %v1017
      %v1030 = vpack.c.b16 %v1018, %v1018
      %v1031 = vpack.c.b16 %v1019, %v1019
      %v1032 = vpack.c.b16 %v1020, %v1020
      %v1033 = vpack.c.b16 %v1021, %v1021
      %v1034 = vpack.c.b16 %v1022, %v1022
      %v1035 = vpack.c.b16 %v1023, %v1023
      %1048 = vst [vmem:[%s305] sm:$0xf] %v1024
      %1049 = vst [vmem:[%s305 + $0x4] sm:$0xf] %v1025
      %1050 = vst [vmem:[%s305 + $0x8] sm:$0xf] %v1026
      %1051 = vst [vmem:[%s305 + $0xc] sm:$0xf] %v1027
      %1052 = vst [vmem:[%s305 + $0x10] sm:$0xf] %v1028
      %1053 = vst [vmem:[%s305 + $0x14] sm:$0xf] %v1029
      %1054 = vst [vmem:[%s305 + $0x18] sm:$0xf] %v1030
      %1055 = vst [vmem:[%s305 + $0x1c] sm:$0xf] %v1031
      %1056 = vst [vmem:[%s305 + $0x20] sm:$0xf] %v1032
      %1057 = vst [vmem:[%s305 + $0x24] sm:$0xf] %v1033
      %1058 = vst [vmem:[%s305 + $0x28] sm:$0xf] %v1034
      %1059 = vst [vmem:[%s305 + $0x2c] sm:$0xf] %v1035
      %s1060 = smul.u32 12, %s19
      %p1061 = scmp.lt.s32.totalorder %s1060, 23
      %s1062 = scalar_select %p1061, %s1060, 23
      %s1063 = smul.addr %s1062, 4
      %s1064 = scalar_lea.vmem %s8, %s1063
      // Predicated region
      $region53: #{simple_net_forward.1} parent=51 // pred_check
        %p1065 = pneg %p210
      $region54: #{simple_net_forward.1} parent=51 // pred_check_branch
        %1067 = sbr.rel (%p1065) target = $region56
      $region55: #{simple_net_forward.1} parent=51 // pred_region
        %s1068 = smul.u32 12, %s19
      $region56: #{simple_net_forward.1} parent=51 // pred_fallthru
        _
    $region52: #{simple_net_forward.1} parent=5 // pred_fallthru
      _
    %p1069 = scmp.le.s32.totalorder 2, %s14
    // Predicated region
    $region57: #{simple_net_forward.1} parent=5 // pred_check
      %p1070 = pneg %p1069
    $region58: #{simple_net_forward.1} parent=5 // pred_check_branch
      %1072 = sbr.rel (%p1070) target = $region60
    $region59: #{simple_net_forward.1} parent=5 // pred_region
      %s1073 = ssub.s32 %s14, 2
      // Predicated region
      $region61: #{simple_net_forward.1} parent=59 // pred_check
        %p1074 = pneg %p216
      $region62: #{simple_net_forward.1} parent=59 // pred_check_branch
        %1076 = sbr.rel (%p1074) target = $region64
      $region63: #{simple_net_forward.1} parent=59 // pred_region
        %s1077 = smul.u32 12, %s20
        %p1078 = scmp.lt.s32.totalorder %s1077, 23
        %s1079 = scalar_select %p1078, %s1077, 23
        %s1080 = smul.addr %s1079, 4
        %s1081 = scalar_lea.vmem %s8, %s1080
      $region64: #{simple_net_forward.1} parent=59 // pred_fallthru
        _
    $region60: #{simple_net_forward.1} parent=5 // pred_fallthru
      _
  $region6: #{simple_net_forward.1} parent=0 // loop_footer
    %s18 = sadd.s32 1, %s14
  $region7: #{simple_net_forward.1} parent=0 // loop_footer_branch
    %13 = sbr.rel target = $region3
  $region8: #{simple_net_forward.1} parent=0 // loop_exit
    _

</llo_original>
